<compile_context>
chip_gen: v6e
topology: v6e:2x2x1
jax: 0.10.0
libtpu: 0.0.40
codegen_flags: <defaults>
</compile_context>

<pallas_src>
import functools

import jax
import jax.numpy as jnp
from jax.experimental import pallas as pl
from jax.experimental.pallas import tpu as pltpu


BN_EPS = 1e-5
LANE = 128

# v_slab row indices
_B_EMB, _B4, _G0, _BE0, _B5, _B6, _B7, _G1, _BE1, _B8, _B9 = range(11)


def encoder_kernel(x_ref, w_ref, v_ref, o_ref):
    n, in_dim = x_ref.shape
    inv_n = 1.0 / n  # static batch size -> compile-time constant

    def vec(i):  # (1, 128) static view of one packed parameter row
        return v_ref[i:i + 1, :]

    def relu(h):
        return jnp.maximum(h, 0.0)

    def linear(h, wi, bi):
        # (n,128) @ (128,128) MXU matmul with f32 accumulation + bias.
        return jnp.dot(h, w_ref[wi], preferred_element_type=jnp.float32) + vec(bi)

    def batchnorm(h, gi, bi):
        # Training-mode BatchNorm1d, single pass, scale/shift form:
        #   scale = gamma * rsqrt(var + eps); shift = beta - mu * scale
        # Only 2 VPU ops touch the (n,128) activation; the per-feature math
        # lives on 1-row vregs. rsqrt goes to the EUP slot.
        s1 = jnp.sum(h, axis=0, keepdims=True)
        s2 = jnp.sum(h * h, axis=0, keepdims=True)
        mu = s1 * inv_n
        var = jnp.maximum(s2 * inv_n - mu * mu, 0.0)  # clamp cancellation
        scale = vec(gi) * jax.lax.rsqrt(var + BN_EPS)
        shift = vec(bi) - mu * scale
        return h * scale + shift

    # --- embedding (4 Linears collapsed into one affine at prepare time) ---
    h = jnp.dot(x_ref[...], w_ref[0, :in_dim, :],
                preferred_element_type=jnp.float32) + vec(_B_EMB)

    # --- encode ---
    h = relu(h)
    h = linear(h, 1, _B4)
    h = batchnorm(h, _G0, _BE0)
    h = relu(h)
    h = linear(h, 2, _B5)
    h = relu(h)
    h = linear(h, 3, _B6)
    h = relu(h)
    h = linear(h, 4, _B7)
    h = batchnorm(h, _G1, _BE1)
    h = relu(h)
    h = linear(h, 5, _B8)
    h = relu(h)
    h = linear(h, 6, _B9)          # lane-dense 128-wide padded output

    o_ref[...] = h.astype(o_ref.dtype)


def init_params(key, config):
    """Deterministic PyTorch-style init: U(-1/sqrt(fan_in), 1/sqrt(fan_in))."""
    dims = [
        (config["in_dim"], config["in_dim"]),
        (config["in_dim"], config["in_dim"]),
        (config["in_dim"], config["in_dim"]),
        (config["in_dim"], config["embedding_dim"]),
        (config["embedding_dim"], config["hidden1_dim"]),
        (config["hidden1_dim"], config["hidden2_dim"]),
        (config["hidden2_dim"], config["hidden3_dim"]),
        (config["hidden3_dim"], config["hidden4_dim"]),
        (config["hidden4_dim"], config["hidden5_dim"]),
        (config["hidden5_dim"], config["encoder_dim"]),
    ]
    weights, biases = [], []
    for i, (fin, fout) in enumerate(dims):
        kw, kb = jax.random.split(jax.random.fold_in(key, i))
        bound = 1.0 / jnp.sqrt(jnp.float32(fin))
        weights.append(jax.random.uniform(kw, (fin, fout), jnp.float32, -bound, bound))
        biases.append(jax.random.uniform(kb, (1, fout), jnp.float32, -bound, bound))
    gamma0 = jnp.ones((1, config["hidden1_dim"]), jnp.float32)
    beta0 = jnp.zeros((1, config["hidden1_dim"]), jnp.float32)
    gamma1 = jnp.ones((1, config["hidden4_dim"]), jnp.float32)
    beta1 = jnp.zeros((1, config["hidden4_dim"]), jnp.float32)
    return weights, biases, (gamma0, beta0, gamma1, beta1)


def prepare_params(weights, biases, bn_params):
    """One-time (NOT per-forward) packing of all parameters into two slabs."""
    w = [jnp.asarray(wi, jnp.float32) for wi in weights]
    b = [jnp.asarray(bi, jnp.float32).reshape(1, -1) for bi in biases]
    g0, be0, g1, be1 = [jnp.asarray(p, jnp.float32).reshape(1, -1) for p in bn_params]

    # Collapse the 4 bias-only embedding Linears into one affine map.
    # (Changes FP summation order vs the reference at ~1e-6 level.)
    w_emb = w[0] @ w[1] @ w[2] @ w[3]
    b_emb = ((b[0] @ w[1] + b[1]) @ w[2] + b[2]) @ w[3] + b[3]

    w_list = [w_emb, w[4], w[5], w[6], w[7], w[8], w[9]]
    v_list = [b_emb, b[4], g0, be0, b[5], b[6], b[7], g1, be1, b[8], b[9]]
    assert all(max(wi.shape) <= LANE for wi in w_list)

    def pad_w(wi):  # zero-pad to (128, 128); zero rows/cols keep pads at 0
        fin, fout = wi.shape
        return jnp.pad(wi, ((0, LANE - fin), (0, LANE - fout)))

    def pad_v(vi):  # zero-pad to (1, 128); gamma padded with 0 on purpose
        return jnp.pad(vi, ((0, 0), (0, LANE - vi.shape[1])))

    w_slab = jnp.stack([pad_w(wi) for wi in w_list])              # (7, 128, 128)
    v_slab = jnp.concatenate([pad_v(vi) for vi in v_list], axis=0)  # (11, 128)
    return w_slab, v_slab


@functools.partial(jax.jit, static_argnames=("encoder_dim",))
def encoder_forward(x, w_slab, v_slab, *, encoder_dim):
    x = x.astype(jnp.float32)   # data_in.float()
    n = x.shape[0]

    flops = 2 * n * LANE * LANE * w_slab.shape[0]
    bytes_accessed = (x.size + w_slab.size + v_slab.size + n * LANE) * 4

    out_padded = pl.pallas_call(
        encoder_kernel,
        out_shape=jax.ShapeDtypeStruct((n, LANE), jnp.float32),
        in_specs=[pl.BlockSpec(memory_space=pltpu.VMEM)] * 3,
        out_specs=pl.BlockSpec(memory_space=pltpu.VMEM),
        cost_estimate=pl.CostEstimate(
            flops=flops, transcendentals=2 * LANE, bytes_accessed=bytes_accessed),
    )(x, w_slab, v_slab)

    return out_padded[:, :encoder_dim]


def encoder_reference(x, weights, biases, bn_params):
    """Pure-JAX reference matching the PyTorch module (training-mode BN)."""
    g0, be0, g1, be1 = bn_params
    relu = lambda t: jnp.maximum(t, 0.0)

    def bn(h, g, b):
        mu = jnp.mean(h, axis=0, keepdims=True)
        var = jnp.mean((h - mu) ** 2, axis=0, keepdims=True)
        return (h - mu) / jnp.sqrt(var + BN_EPS) * g + b

    h = x.astype(jnp.float32)
    for i in range(4):
        h = h @ weights[i] + biases[i]
    h = relu(h)
    h = h @ weights[4] + biases[4]; h = bn(h, g0, be0); h = relu(h)
    h = h @ weights[5] + biases[5]; h = relu(h)
    h = h @ weights[6] + biases[6]; h = relu(h)
    h = h @ weights[7] + biases[7]; h = bn(h, g1, be1); h = relu(h)
    h = h @ weights[8] + biases[8]; h = relu(h)
    h = h @ weights[9] + biases[9]
    return h


if __name__ == "__main__":
    config = {
        "in_dim": 32,
        "embedding_dim": 32,
        "hidden1_dim": 64,
        "hidden2_dim": 64,
        "hidden3_dim": 32,
        "hidden4_dim": 32,
        "hidden5_dim": 32,
        "encoder_dim": 16,
    }
    batch = 8

    key = jax.random.PRNGKey(0)
    kx, kp = jax.random.split(key)
    x = jax.random.normal(kx, (batch, config["in_dim"]), jnp.float32)

    weights, biases, bn_params = init_params(kp, config)
    w_slab, v_slab = prepare_params(weights, biases, bn_params)  # one-time

    out = encoder_forward(x, w_slab, v_slab, encoder_dim=config["encoder_dim"])
    jax.block_until_ready(out)
    assert out.shape == (batch, config["encoder_dim"])

    ref = encoder_reference(x, weights, biases, bn_params)
    max_err = float(jnp.max(jnp.abs(out - ref)))
    assert max_err < 1e-3, f"max abs error vs reference: {max_err}"

    print("KERNEL_OK")
</pallas_src>

<mosaic_0001>
module attributes {stable_mosaic.version = 11 : i64} {
  func.func @encoder_kernel(%arg0: memref<8x32xf32, #tpu.memory_space<vmem>>, %arg1: memref<7x128x128xf32, #tpu.memory_space<vmem>>, %arg2: memref<11x128xf32, #tpu.memory_space<vmem>>, %arg3: memref<8x128xf32, #tpu.memory_space<vmem>>) attributes {dimension_semantics = [], scalar_prefetch = 0 : i64, scratch_operands = 0 : i64, tpu.core_type = #tpu.core_type<tc>} {
    %c0 = arith.constant 0 : index
    %c0_0 = arith.constant 0 : index
    %0 = vector.load %arg0[%c0, %c0_0] : memref<8x32xf32, #tpu.memory_space<vmem>>, vector<8x32xf32>
    %c0_1 = arith.constant 0 : index
    %c0_2 = arith.constant 0 : index
    %c0_3 = arith.constant 0 : index
    %1 = vector.load %arg1[%c0_1, %c0_2, %c0_3] : memref<7x128x128xf32, #tpu.memory_space<vmem>>, vector<1x32x128xf32>
    %2 = vector.shape_cast %1 : vector<1x32x128xf32> to vector<32x128xf32>
    %cst = arith.constant dense<0.000000e+00> : vector<8x128xf32>
    %3 = tpu.matmul %0, %2, %cst {dimension_numbers = #tpu.dot_dimension_numbers<[1], [0], [0], [1], [0, 0, 1, 1], [], []>} : vector<8x32xf32>, vector<32x128xf32>, vector<8x128xf32> -> vector<8x128xf32>
    %c0_4 = arith.constant 0 : index
    %c0_5 = arith.constant 0 : index
    %4 = vector.load %arg2[%c0_4, %c0_5] : memref<11x128xf32, #tpu.memory_space<vmem>>, vector<1x128xf32>
    %5 = vector.broadcast %4 : vector<1x128xf32> to vector<8x128xf32>
    %6 = arith.addf %3, %5 : vector<8x128xf32>
    %cst_6 = arith.constant 0.000000e+00 : f32
    %7 = vector.broadcast %cst_6 : f32 to vector<8x128xf32>
    %8 = arith.maximumf %6, %7 : vector<8x128xf32>
    %c1 = arith.constant 1 : index
    %c0_7 = arith.constant 0 : index
    %c0_8 = arith.constant 0 : index
    %9 = vector.load %arg1[%c1, %c0_7, %c0_8] : memref<7x128x128xf32, #tpu.memory_space<vmem>>, vector<1x128x128xf32>
    %10 = vector.shape_cast %9 : vector<1x128x128xf32> to vector<128x128xf32>
    %cst_9 = arith.constant dense<0.000000e+00> : vector<8x128xf32>
    %11 = tpu.matmul %8, %10, %cst_9 {dimension_numbers = #tpu.dot_dimension_numbers<[1], [0], [0], [1], [0, 0, 1, 1], [], []>} : vector<8x128xf32>, vector<128x128xf32>, vector<8x128xf32> -> vector<8x128xf32>
    %c1_10 = arith.constant 1 : index
    %c0_11 = arith.constant 0 : index
    %12 = vector.load %arg2[%c1_10, %c0_11] : memref<11x128xf32, #tpu.memory_space<vmem>>, vector<1x128xf32>
    %13 = vector.broadcast %12 : vector<1x128xf32> to vector<8x128xf32>
    %14 = arith.addf %11, %13 : vector<8x128xf32>
    %cst_12 = arith.constant dense<0.000000e+00> : vector<128xf32>
    %15 = vector.multi_reduction <add>, %14, %cst_12 [0] : vector<8x128xf32> to vector<128xf32>
    %16 = vector.shape_cast %15 : vector<128xf32> to vector<1x128xf32>
    %17 = arith.mulf %14, %14 : vector<8x128xf32>
    %cst_13 = arith.constant dense<0.000000e+00> : vector<128xf32>
    %18 = vector.multi_reduction <add>, %17, %cst_13 [0] : vector<8x128xf32> to vector<128xf32>
    %19 = vector.shape_cast %18 : vector<128xf32> to vector<1x128xf32>
    %cst_14 = arith.constant 1.250000e-01 : f32
    %20 = vector.broadcast %cst_14 : f32 to vector<1x128xf32>
    %21 = arith.mulf %16, %20 : vector<1x128xf32>
    %cst_15 = arith.constant 1.250000e-01 : f32
    %22 = vector.broadcast %cst_15 : f32 to vector<1x128xf32>
    %23 = arith.mulf %19, %22 : vector<1x128xf32>
    %24 = arith.mulf %21, %21 : vector<1x128xf32>
    %25 = arith.subf %23, %24 : vector<1x128xf32>
    %cst_16 = arith.constant 0.000000e+00 : f32
    %26 = vector.broadcast %cst_16 : f32 to vector<1x128xf32>
    %27 = arith.maximumf %25, %26 : vector<1x128xf32>
    %c2 = arith.constant 2 : index
    %c0_17 = arith.constant 0 : index
    %28 = vector.load %arg2[%c2, %c0_17] : memref<11x128xf32, #tpu.memory_space<vmem>>, vector<1x128xf32>
    %cst_18 = arith.constant 9.99999974E-6 : f32
    %29 = vector.broadcast %cst_18 : f32 to vector<1x128xf32>
    %30 = arith.addf %27, %29 : vector<1x128xf32>
    %31 = math.rsqrt %30 : vector<1x128xf32>
    %32 = arith.mulf %28, %31 : vector<1x128xf32>
    %c3 = arith.constant 3 : index
    %c0_19 = arith.constant 0 : index
    %33 = vector.load %arg2[%c3, %c0_19] : memref<11x128xf32, #tpu.memory_space<vmem>>, vector<1x128xf32>
    %34 = arith.mulf %21, %32 : vector<1x128xf32>
    %35 = arith.subf %33, %34 : vector<1x128xf32>
    %36 = vector.broadcast %32 : vector<1x128xf32> to vector<8x128xf32>
    %37 = arith.mulf %14, %36 : vector<8x128xf32>
    %38 = vector.broadcast %35 : vector<1x128xf32> to vector<8x128xf32>
    %39 = arith.addf %37, %38 : vector<8x128xf32>
    %cst_20 = arith.constant 0.000000e+00 : f32
    %40 = vector.broadcast %cst_20 : f32 to vector<8x128xf32>
    %41 = arith.maximumf %39, %40 : vector<8x128xf32>
    %c2_21 = arith.constant 2 : index
    %c0_22 = arith.constant 0 : index
    %c0_23 = arith.constant 0 : index
    %42 = vector.load %arg1[%c2_21, %c0_22, %c0_23] : memref<7x128x128xf32, #tpu.memory_space<vmem>>, vector<1x128x128xf32>
    %43 = vector.shape_cast %42 : vector<1x128x128xf32> to vector<128x128xf32>
    %cst_24 = arith.constant dense<0.000000e+00> : vector<8x128xf32>
    %44 = tpu.matmul %41, %43, %cst_24 {dimension_numbers = #tpu.dot_dimension_numbers<[1], [0], [0], [1], [0, 0, 1, 1], [], []>} : vector<8x128xf32>, vector<128x128xf32>, vector<8x128xf32> -> vector<8x128xf32>
    %c4 = arith.constant 4 : index
    %c0_25 = arith.constant 0 : index
    %45 = vector.load %arg2[%c4, %c0_25] : memref<11x128xf32, #tpu.memory_space<vmem>>, vector<1x128xf32>
    %46 = vector.broadcast %45 : vector<1x128xf32> to vector<8x128xf32>
    %47 = arith.addf %44, %46 : vector<8x128xf32>
    %cst_26 = arith.constant 0.000000e+00 : f32
    %48 = vector.broadcast %cst_26 : f32 to vector<8x128xf32>
    %49 = arith.maximumf %47, %48 : vector<8x128xf32>
    %c3_27 = arith.constant 3 : index
    %c0_28 = arith.constant 0 : index
    %c0_29 = arith.constant 0 : index
    %50 = vector.load %arg1[%c3_27, %c0_28, %c0_29] : memref<7x128x128xf32, #tpu.memory_space<vmem>>, vector<1x128x128xf32>
    %51 = vector.shape_cast %50 : vector<1x128x128xf32> to vector<128x128xf32>
    %cst_30 = arith.constant dense<0.000000e+00> : vector<8x128xf32>
    %52 = tpu.matmul %49, %51, %cst_30 {dimension_numbers = #tpu.dot_dimension_numbers<[1], [0], [0], [1], [0, 0, 1, 1], [], []>} : vector<8x128xf32>, vector<128x128xf32>, vector<8x128xf32> -> vector<8x128xf32>
    %c5 = arith.constant 5 : index
    %c0_31 = arith.constant 0 : index
    %53 = vector.load %arg2[%c5, %c0_31] : memref<11x128xf32, #tpu.memory_space<vmem>>, vector<1x128xf32>
    %54 = vector.broadcast %53 : vector<1x128xf32> to vector<8x128xf32>
    %55 = arith.addf %52, %54 : vector<8x128xf32>
    %cst_32 = arith.constant 0.000000e+00 : f32
    %56 = vector.broadcast %cst_32 : f32 to vector<8x128xf32>
    %57 = arith.maximumf %55, %56 : vector<8x128xf32>
    %c4_33 = arith.constant 4 : index
    %c0_34 = arith.constant 0 : index
    %c0_35 = arith.constant 0 : index
    %58 = vector.load %arg1[%c4_33, %c0_34, %c0_35] : memref<7x128x128xf32, #tpu.memory_space<vmem>>, vector<1x128x128xf32>
    %59 = vector.shape_cast %58 : vector<1x128x128xf32> to vector<128x128xf32>
    %cst_36 = arith.constant dense<0.000000e+00> : vector<8x128xf32>
    %60 = tpu.matmul %57, %59, %cst_36 {dimension_numbers = #tpu.dot_dimension_numbers<[1], [0], [0], [1], [0, 0, 1, 1], [], []>} : vector<8x128xf32>, vector<128x128xf32>, vector<8x128xf32> -> vector<8x128xf32>
    %c6 = arith.constant 6 : index
    %c0_37 = arith.constant 0 : index
    %61 = vector.load %arg2[%c6, %c0_37] : memref<11x128xf32, #tpu.memory_space<vmem>>, vector<1x128xf32>
    %62 = vector.broadcast %61 : vector<1x128xf32> to vector<8x128xf32>
    %63 = arith.addf %60, %62 : vector<8x128xf32>
    %cst_38 = arith.constant dense<0.000000e+00> : vector<128xf32>
    %64 = vector.multi_reduction <add>, %63, %cst_38 [0] : vector<8x128xf32> to vector<128xf32>
    %65 = vector.shape_cast %64 : vector<128xf32> to vector<1x128xf32>
    %66 = arith.mulf %63, %63 : vector<8x128xf32>
    %cst_39 = arith.constant dense<0.000000e+00> : vector<128xf32>
    %67 = vector.multi_reduction <add>, %66, %cst_39 [0] : vector<8x128xf32> to vector<128xf32>
    %68 = vector.shape_cast %67 : vector<128xf32> to vector<1x128xf32>
    %cst_40 = arith.constant 1.250000e-01 : f32
    %69 = vector.broadcast %cst_40 : f32 to vector<1x128xf32>
    %70 = arith.mulf %65, %69 : vector<1x128xf32>
    %cst_41 = arith.constant 1.250000e-01 : f32
    %71 = vector.broadcast %cst_41 : f32 to vector<1x128xf32>
    %72 = arith.mulf %68, %71 : vector<1x128xf32>
    %73 = arith.mulf %70, %70 : vector<1x128xf32>
    %74 = arith.subf %72, %73 : vector<1x128xf32>
    %cst_42 = arith.constant 0.000000e+00 : f32
    %75 = vector.broadcast %cst_42 : f32 to vector<1x128xf32>
    %76 = arith.maximumf %74, %75 : vector<1x128xf32>
    %c7 = arith.constant 7 : index
    %c0_43 = arith.constant 0 : index
    %77 = vector.load %arg2[%c7, %c0_43] : memref<11x128xf32, #tpu.memory_space<vmem>>, vector<1x128xf32>
    %cst_44 = arith.constant 9.99999974E-6 : f32
    %78 = vector.broadcast %cst_44 : f32 to vector<1x128xf32>
    %79 = arith.addf %76, %78 : vector<1x128xf32>
    %80 = math.rsqrt %79 : vector<1x128xf32>
    %81 = arith.mulf %77, %80 : vector<1x128xf32>
    %c8 = arith.constant 8 : index
    %c0_45 = arith.constant 0 : index
    %82 = vector.load %arg2[%c8, %c0_45] : memref<11x128xf32, #tpu.memory_space<vmem>>, vector<1x128xf32>
    %83 = arith.mulf %70, %81 : vector<1x128xf32>
    %84 = arith.subf %82, %83 : vector<1x128xf32>
    %85 = vector.broadcast %81 : vector<1x128xf32> to vector<8x128xf32>
    %86 = arith.mulf %63, %85 : vector<8x128xf32>
    %87 = vector.broadcast %84 : vector<1x128xf32> to vector<8x128xf32>
    %88 = arith.addf %86, %87 : vector<8x128xf32>
    %cst_46 = arith.constant 0.000000e+00 : f32
    %89 = vector.broadcast %cst_46 : f32 to vector<8x128xf32>
    %90 = arith.maximumf %88, %89 : vector<8x128xf32>
    %c5_47 = arith.constant 5 : index
    %c0_48 = arith.constant 0 : index
    %c0_49 = arith.constant 0 : index
    %91 = vector.load %arg1[%c5_47, %c0_48, %c0_49] : memref<7x128x128xf32, #tpu.memory_space<vmem>>, vector<1x128x128xf32>
    %92 = vector.shape_cast %91 : vector<1x128x128xf32> to vector<128x128xf32>
    %cst_50 = arith.constant dense<0.000000e+00> : vector<8x128xf32>
    %93 = tpu.matmul %90, %92, %cst_50 {dimension_numbers = #tpu.dot_dimension_numbers<[1], [0], [0], [1], [0, 0, 1, 1], [], []>} : vector<8x128xf32>, vector<128x128xf32>, vector<8x128xf32> -> vector<8x128xf32>
    %c9 = arith.constant 9 : index
    %c0_51 = arith.constant 0 : index
    %94 = vector.load %arg2[%c9, %c0_51] : memref<11x128xf32, #tpu.memory_space<vmem>>, vector<1x128xf32>
    %95 = vector.broadcast %94 : vector<1x128xf32> to vector<8x128xf32>
    %96 = arith.addf %93, %95 : vector<8x128xf32>
    %cst_52 = arith.constant 0.000000e+00 : f32
    %97 = vector.broadcast %cst_52 : f32 to vector<8x128xf32>
    %98 = arith.maximumf %96, %97 : vector<8x128xf32>
    %c6_53 = arith.constant 6 : index
    %c0_54 = arith.constant 0 : index
    %c0_55 = arith.constant 0 : index
    %99 = vector.load %arg1[%c6_53, %c0_54, %c0_55] : memref<7x128x128xf32, #tpu.memory_space<vmem>>, vector<1x128x128xf32>
    %100 = vector.shape_cast %99 : vector<1x128x128xf32> to vector<128x128xf32>
    %cst_56 = arith.constant dense<0.000000e+00> : vector<8x128xf32>
    %101 = tpu.matmul %98, %100, %cst_56 {dimension_numbers = #tpu.dot_dimension_numbers<[1], [0], [0], [1], [0, 0, 1, 1], [], []>} : vector<8x128xf32>, vector<128x128xf32>, vector<8x128xf32> -> vector<8x128xf32>
    %c10 = arith.constant 10 : index
    %c0_57 = arith.constant 0 : index
    %102 = vector.load %arg2[%c10, %c0_57] : memref<11x128xf32, #tpu.memory_space<vmem>>, vector<1x128xf32>
    %103 = vector.broadcast %102 : vector<1x128xf32> to vector<8x128xf32>
    %104 = arith.addf %101, %103 : vector<8x128xf32>
    %c0_58 = arith.constant 0 : index
    %c0_59 = arith.constant 0 : index
    %105 = vector.load %arg3[%c0_58, %c0_59] : memref<8x128xf32, #tpu.memory_space<vmem>>, vector<8x128xf32>
    tpu.vector_store %arg3[%c0_58, %c0_59], %104 {strides = array<i32>} : memref<8x128xf32, #tpu.memory_space<vmem>>, vector<8x128xf32>,
    return
  }
}

</mosaic_0001>

<llo_original>
// kernel: encoder_forward.1
$region0: #{encoder_forward.1}
  #allocation0 [shape = 'u32[]', space=smem, size = 0x4, offset = 0x4, fixed_abs, tag = 'smem constant byte address 0x4 - core index']
  #allocation1 [shape = 'u32[144,128]{1,0:T(1,128)}', space=vmem, size = 0x12000, scoped, tag = 'internal scratch']
  %s0 = inlined_call_operand.hbm [shape: f32[8,32], index: 0, kind: input, shape index: {}]
  %s1 = inlined_call_operand.hbm [shape: f32[7,128,128], index: 1, kind: input, shape index: {}]
  %s2 = inlined_call_operand.hbm [shape: f32[11,128], index: 2, kind: input, shape index: {}]
  %s3 = inlined_call_operand.hbm [shape: f32[8,128], index: 3, kind: output, shape index: {}]
  %s4 = sld [smem:[#allocation0]]
  $region34: #{encoder_forward.1} parent=0
    _
  %s6 = ssub.s32 1, %s4
  %s7 = scalar_select 0, %s6, %s4
  $region1: #{encoder_forward.1} parent=0
    #allocation2 [shape = 'u8[4096]{0}', space=vmem, size = 0x1000, scoped, tag = 'input window, operand 0, single buffered']
    #allocation3 [shape = 's32[1]{0}', space=sflag, size = 0x4, scoped, tag = 'scoped memory for encoder_forward.1']
    #allocation4 [shape = 's32[1]{0}', space=sflag, size = 0x4, scoped, tag = 'scoped memory for encoder_forward.1']
    #allocation5 [shape = 'u8[458752]{0}', space=vmem, size = 0x70000, scoped, tag = 'input window, operand 1, single buffered']
    #allocation6 [shape = 's32[1]{0}', space=sflag, size = 0x4, scoped, tag = 'scoped memory for encoder_forward.1']
    #allocation7 [shape = 'u8[8192]{0}', space=vmem, size = 0x2000, scoped, tag = 'input window, operand 2, single buffered']
    #allocation8 [shape = 'u8[4096]{0}', space=vmem, size = 0x1000, scoped, tag = 'output window, operand 0, single buffered']
    %8 = vsyncpa [#allocation3], 0
    %9 = vsyncpa [#allocation6], 0
    %10 = vsyncpa [#allocation4], 0
    // Predicated region
    $region2: #{encoder_forward.1} parent=1 // pred_check
      _
    $region3: #{encoder_forward.1} parent=1 // pred_check_branch
      %12 = sbr.rel (0) target = $region5
    $region4: #{encoder_forward.1} parent=1 // pred_region
      %s14 = ssub.s32 128, 128
      %15 = vsyncadd [#allocation3], %s14
      %s17 = sshll.u32 [#allocation2], 4
      %s18 = int_to_ptr.vmem [resolvable:$true] %s17
      %20 = dma.hbm_to_vmem [thread:$0]  %s0, 128, %s18, [#allocation3]
    $region5: #{encoder_forward.1} parent=1 // pred_fallthru
      _
    // Predicated region
    $region6: #{encoder_forward.1} parent=1 // pred_check
      _
    $region7: #{encoder_forward.1} parent=1 // pred_check_branch
      %22 = sbr.rel (0) target = $region9
    $region8: #{encoder_forward.1} parent=1 // pred_region
      %s24 = ssub.s32 14336, 14336
      %25 = vsyncadd [#allocation6], %s24
      %s26 = sshll.u32 [#allocation5], 4
      %s27 = int_to_ptr.vmem [resolvable:$true] %s26
      %32 = dma.hbm_to_vmem [thread:$0]  %s1, 14336, %s27, [#allocation6], 128, 128, 8
    $region9: #{encoder_forward.1} parent=1 // pred_fallthru
      _
    // Predicated region
    $region10: #{encoder_forward.1} parent=1 // pred_check
      _
    $region11: #{encoder_forward.1} parent=1 // pred_check_branch
      %34 = sbr.rel (0) target = $region13
    $region12: #{encoder_forward.1} parent=1 // pred_region
      %s36 = ssub.s32 256, 256
      %37 = vsyncadd [#allocation6], %s36
      %s38 = sshll.u32 [#allocation7], 4
      %s39 = int_to_ptr.vmem [resolvable:$true] %s38
      %44 = dma.hbm_to_vmem [thread:$0]  %s2, 256, %s39, [#allocation6], 128, 128, 8
    $region13: #{encoder_forward.1} parent=1 // pred_fallthru
      _
    // Predicated region
    $region14: #{encoder_forward.1} parent=1 // pred_check
      _
    $region15: #{encoder_forward.1} parent=1 // pred_check_branch
      %46 = sbr.rel (0) target = $region17
    $region16: #{encoder_forward.1} parent=1 // pred_region
      %47 = dma.done [#allocation3], 128
    $region17: #{encoder_forward.1} parent=1 // pred_fallthru
      _
    // Predicated region
    $region18: #{encoder_forward.1} parent=1 // pred_check
      _
    $region19: #{encoder_forward.1} parent=1 // pred_check_branch
      %49 = sbr.rel (0) target = $region21
    $region20: #{encoder_forward.1} parent=1 // pred_region
      %50 = dma.done [#allocation6], 14336
    $region21: #{encoder_forward.1} parent=1 // pred_fallthru
      _
    // Predicated region
    $region22: #{encoder_forward.1} parent=1 // pred_check
      _
    $region23: #{encoder_forward.1} parent=1 // pred_check_branch
      %52 = sbr.rel (0) target = $region25
    $region24: #{encoder_forward.1} parent=1 // pred_region
      %53 = dma.done [#allocation6], 256
    $region25: #{encoder_forward.1} parent=1 // pred_fallthru
      _
    %v54 = vld [vmem:[#allocation2] sm:$0xff]
    %v55 = vld [vmem:[#allocation5] sm:$0xff]
    %v56 = vld [vmem:[#allocation5 + $0x8] sm:$0xff]
    %v57 = vld [vmem:[#allocation5 + $0x10] sm:$0xff]
    %v58 = vld [vmem:[#allocation5 + $0x18] sm:$0xff]
    %v59 = vld [vmem:[#allocation7] sm:$0x1]
    %v60 = vlaneseq
    %v61 = vshrl.u32 %v60, 7
    %v62 = vsub.s32 0, %v61
    %v63 = vrot.slane %v59, %v62
    %vm64 = vcmask 261120
    %v66 = vsel %vm64, %v54, 0
    %68 = vmatprep.subr.mxu0 0.0
    %69 = vmatpush1.msra.mxu0 0.0
    %70 = vmatprep.subr.mxu0 0.0
    %71 = vmatpush1.msra.mxu0 0.0
    %72 = vmatprep.subr.mxu0 0.0
    %73 = vmatpush1.msra.mxu0 0.0
    %74 = vmatprep.subr.mxu0 0.0
    %75 = vmatpush1.msra.mxu0 0.0
    %76 = vmatprep.subr.mxu0 0.0
    %77 = vmatpush1.msra.mxu0 0.0
    %78 = vmatprep.subr.mxu0 0.0
    %79 = vmatpush1.msra.mxu0 0.0
    %80 = vmatprep.subr.mxu0 0.0
    %81 = vmatpush1.msra.mxu0 0.0
    %82 = vmatprep.subr.mxu0 0.0
    %83 = vmatpush1.msra.mxu0 0.0
    %84 = vmatprep.subr.mxu0 0.0
    %85 = vmatpush1.msra.mxu0 0.0
    %86 = vmatprep.subr.mxu0 0.0
    %87 = vmatpush1.msra.mxu0 0.0
    %88 = vmatprep.subr.mxu0 0.0
    %89 = vmatpush1.msra.mxu0 0.0
    %90 = vmatprep.subr.mxu0 0.0
    %91 = vmatpush1.msra.mxu0 0.0
    %92 = vmatprep.subr.mxu0 0.0
    %93 = vmatpush1.msra.mxu0 %v58
    %94 = vmatprep.subr.mxu0 0.0
    %95 = vmatpush1.msra.mxu0 %v57
    %96 = vmatprep.subr.mxu0 0.0
    %97 = vmatpush1.msra.mxu0 %v56
    %98 = vmatprep.subr.mxu0 0.0
    %99 = vmatpush1.msra.mxu0 %v55
    %100 = vmatprep.subr.mxu0 0.0
    %101 = vmatpush2.msra.mxu0 0.0
    %102 = vmatprep.subr.mxu0 0.0
    %103 = vmatpush2.msra.mxu0 0.0
    %104 = vmatprep.subr.mxu0 0.0
    %105 = vmatpush2.msra.mxu0 0.0
    %106 = vmatprep.subr.mxu0 0.0
    %107 = vmatpush2.msra.mxu0 0.0
    %108 = vmatprep.subr.mxu0 0.0
    %109 = vmatpush2.msra.mxu0 0.0
    %110 = vmatprep.subr.mxu0 0.0
    %111 = vmatpush2.msra.mxu0 0.0
    %112 = vmatprep.subr.mxu0 0.0
    %113 = vmatpush2.msra.mxu0 0.0
    %114 = vmatprep.subr.mxu0 0.0
    %115 = vmatpush2.msra.mxu0 0.0
    %116 = vmatprep.subr.mxu0 0.0
    %117 = vmatpush2.msra.mxu0 0.0
    %118 = vmatprep.subr.mxu0 0.0
    %119 = vmatpush2.msra.mxu0 0.0
    %120 = vmatprep.subr.mxu0 0.0
    %121 = vmatpush2.msra.mxu0 0.0
    %122 = vmatprep.subr.mxu0 0.0
    %123 = vmatpush2.msra.mxu0 0.0
    %124 = vmatprep.subr.mxu0 0.0
    %125 = vmatpush2.msra.mxu0 0.0
    %126 = vmatprep.subr.mxu0 0.0
    %127 = vmatpush2.msra.mxu0 0.0
    %128 = vmatprep.subr.mxu0 0.0
    %129 = vmatpush2.msra.mxu0 0.0
    %130 = vmatprep.subr.mxu0 0.0
    %131 = vmatpush2.msra.mxu0 0.0
    %132 = vmatprep.mubr.f32.mxu0 0.0
    %133 = vmatmul.mubr.f32.gmra.mxu0 %v66
    %v134 = vpop.f32.mrf.mxu0
    %v135 = vadd.f32 %v63, %v134
    %v136 = vpop.f32.mrf.mxu0
    %137 = vdwg.mxu0
    %v138 = vmax.f32 %v135, 0.0
    %s139 = scalar_lea.vmem [#allocation5], 128
    %v140 = vld [vmem:[%s139] sm:$0xff]
    %v141 = vld [vmem:[%s139 + $0x8] sm:$0xff]
    %v142 = vld [vmem:[%s139 + $0x10] sm:$0xff]
    %v143 = vld [vmem:[%s139 + $0x18] sm:$0xff]
    %v144 = vld [vmem:[%s139 + $0x20] sm:$0xff]
    %v145 = vld [vmem:[%s139 + $0x28] sm:$0xff]
    %v146 = vld [vmem:[%s139 + $0x30] sm:$0xff]
    %v147 = vld [vmem:[%s139 + $0x38] sm:$0xff]
    %v148 = vld [vmem:[%s139 + $0x40] sm:$0xff]
    %v149 = vld [vmem:[%s139 + $0x48] sm:$0xff]
    %v150 = vld [vmem:[%s139 + $0x50] sm:$0xff]
    %v151 = vld [vmem:[%s139 + $0x58] sm:$0xff]
    %v152 = vld [vmem:[%s139 + $0x60] sm:$0xff]
    %v153 = vld [vmem:[%s139 + $0x68] sm:$0xff]
    %v154 = vld [vmem:[%s139 + $0x70] sm:$0xff]
    %v155 = vld [vmem:[%s139 + $0x78] sm:$0xff]
    %v156 = vld [vmem:[#allocation7 + $0x1] sm:$0x1]
    %v157 = vlaneseq
    %v158 = vshrl.u32 %v157, 7
    %v159 = vsub.s32 0, %v158
    %v160 = vrot.slane %v156, %v159
    %161 = vmatprep.subr.mxu0 0.0
    %162 = vmatpush1.msra.mxu0 %v155
    %163 = vmatprep.subr.mxu0 0.0
    %164 = vmatpush1.msra.mxu0 %v154
    %165 = vmatprep.subr.mxu0 0.0
    %166 = vmatpush1.msra.mxu0 %v153
    %167 = vmatprep.subr.mxu0 0.0
    %168 = vmatpush1.msra.mxu0 %v152
    %169 = vmatprep.subr.mxu0 0.0
    %170 = vmatpush1.msra.mxu0 %v151
    %171 = vmatprep.subr.mxu0 0.0
    %172 = vmatpush1.msra.mxu0 %v150
    %173 = vmatprep.subr.mxu0 0.0
    %174 = vmatpush1.msra.mxu0 %v149
    %175 = vmatprep.subr.mxu0 0.0
    %176 = vmatpush1.msra.mxu0 %v148
    %177 = vmatprep.subr.mxu0 0.0
    %178 = vmatpush1.msra.mxu0 %v147
    %179 = vmatprep.subr.mxu0 0.0
    %180 = vmatpush1.msra.mxu0 %v146
    %181 = vmatprep.subr.mxu0 0.0
    %182 = vmatpush1.msra.mxu0 %v145
    %183 = vmatprep.subr.mxu0 0.0
    %184 = vmatpush1.msra.mxu0 %v144
    %185 = vmatprep.subr.mxu0 0.0
    %186 = vmatpush1.msra.mxu0 %v143
    %187 = vmatprep.subr.mxu0 0.0
    %188 = vmatpush1.msra.mxu0 %v142
    %189 = vmatprep.subr.mxu0 0.0
    %190 = vmatpush1.msra.mxu0 %v141
    %191 = vmatprep.subr.mxu0 0.0
    %192 = vmatpush1.msra.mxu0 %v140
    %193 = vmatprep.subr.mxu0 0.0
    %194 = vmatpush2.msra.mxu0 0.0
    %195 = vmatprep.subr.mxu0 0.0
    %196 = vmatpush2.msra.mxu0 0.0
    %197 = vmatprep.subr.mxu0 0.0
    %198 = vmatpush2.msra.mxu0 0.0
    %199 = vmatprep.subr.mxu0 0.0
    %200 = vmatpush2.msra.mxu0 0.0
    %201 = vmatprep.subr.mxu0 0.0
    %202 = vmatpush2.msra.mxu0 0.0
    %203 = vmatprep.subr.mxu0 0.0
    %204 = vmatpush2.msra.mxu0 0.0
    %205 = vmatprep.subr.mxu0 0.0
    %206 = vmatpush2.msra.mxu0 0.0
    %207 = vmatprep.subr.mxu0 0.0
    %208 = vmatpush2.msra.mxu0 0.0
    %209 = vmatprep.subr.mxu0 0.0
    %210 = vmatpush2.msra.mxu0 0.0
    %211 = vmatprep.subr.mxu0 0.0
    %212 = vmatpush2.msra.mxu0 0.0
    %213 = vmatprep.subr.mxu0 0.0
    %214 = vmatpush2.msra.mxu0 0.0
    %215 = vmatprep.subr.mxu0 0.0
    %216 = vmatpush2.msra.mxu0 0.0
    %217 = vmatprep.subr.mxu0 0.0
    %218 = vmatpush2.msra.mxu0 0.0
    %219 = vmatprep.subr.mxu0 0.0
    %220 = vmatpush2.msra.mxu0 0.0
    %221 = vmatprep.subr.mxu0 0.0
    %222 = vmatpush2.msra.mxu0 0.0
    %223 = vmatprep.subr.mxu0 0.0
    %224 = vmatpush2.msra.mxu0 0.0
    %225 = vmatprep.mubr.f32.mxu0 0.0
    %226 = vmatmul.mubr.f32.gmra.mxu0 %v138
    %v227 = vpop.f32.mrf.mxu0
    %v228 = vadd.f32 %v160, %v227
    %v229 = vpop.f32.mrf.mxu0
    %230 = vdwg.mxu0
    %v231 = vrot.slane %v228, 4
    %v232 = vadd.f32 %v228, %v231
    %v233 = vrot.slane %v232, 2
    %v234 = vadd.f32 %v232, %v233
    %v235 = vrot.slane %v234, 1
    %v236 = vadd.f32 %v234, %v235
    %v237 = vmul.f32 %v228, %v228
    %v238 = vrot.slane %v237, 4
    %v239 = vadd.f32 %v237, %v238
    %v240 = vrot.slane %v239, 2
    %v241 = vadd.f32 %v239, %v240
    %v242 = vrot.slane %v241, 1
    %v243 = vadd.f32 %v241, %v242
    %v244 = vmul.f32 %v236, 0.125
    %v245 = vmul.f32 %v243, 0.125
    %v246 = vmul.f32 %v244, %v244
    %v247 = vsub.f32 %v245, %v246
    %v248 = vmax.f32 %v247, 0.0
    %v249 = vld [vmem:[#allocation7 + $0x2] sm:$0x1]
    %v250 = vadd.f32 %v248, 1e-05
    %v251 = vrsqrt.pop %v250
    %v252 = vmul.f32 %v249, %v251
    %v253 = vld [vmem:[#allocation7 + $0x3] sm:$0x1]
    %v254 = vmul.f32 %v244, %v252
    %v255 = vsub.f32 %v253, %v254
    %v256 = vlaneseq
    %v257 = vshrl.u32 %v256, 7
    %v258 = vsub.s32 0, %v257
    %v259 = vrot.slane %v252, %v258
    %v260 = vmul.f32 %v228, %v259
    %v261 = vlaneseq
    %v262 = vshrl.u32 %v261, 7
    %v263 = vsub.s32 0, %v262
    %v264 = vrot.slane %v255, %v263
    %v265 = vadd.f32 %v260, %v264
    %v266 = vmax.f32 %v265, 0.0
    %s267 = scalar_lea.vmem [#allocation5], 256
    %v268 = vld [vmem:[%s267] sm:$0xff]
    %v269 = vld [vmem:[%s267 + $0x8] sm:$0xff]
    %v270 = vld [vmem:[%s267 + $0x10] sm:$0xff]
    %v271 = vld [vmem:[%s267 + $0x18] sm:$0xff]
    %v272 = vld [vmem:[%s267 + $0x20] sm:$0xff]
    %v273 = vld [vmem:[%s267 + $0x28] sm:$0xff]
    %v274 = vld [vmem:[%s267 + $0x30] sm:$0xff]
    %v275 = vld [vmem:[%s267 + $0x38] sm:$0xff]
    %v276 = vld [vmem:[%s267 + $0x40] sm:$0xff]
    %v277 = vld [vmem:[%s267 + $0x48] sm:$0xff]
    %v278 = vld [vmem:[%s267 + $0x50] sm:$0xff]
    %v279 = vld [vmem:[%s267 + $0x58] sm:$0xff]
    %v280 = vld [vmem:[%s267 + $0x60] sm:$0xff]
    %v281 = vld [vmem:[%s267 + $0x68] sm:$0xff]
    %v282 = vld [vmem:[%s267 + $0x70] sm:$0xff]
    %v283 = vld [vmem:[%s267 + $0x78] sm:$0xff]
    %v284 = vld [vmem:[#allocation7 + $0x4] sm:$0x1]
    %v285 = vlaneseq
    %v286 = vshrl.u32 %v285, 7
    %v287 = vsub.s32 0, %v286
    %v288 = vrot.slane %v284, %v287
    %289 = vmatprep.subr.mxu0 0.0
    %290 = vmatpush1.msra.mxu0 %v283
    %291 = vmatprep.subr.mxu0 0.0
    %292 = vmatpush1.msra.mxu0 %v282
    %293 = vmatprep.subr.mxu0 0.0
    %294 = vmatpush1.msra.mxu0 %v281
    %295 = vmatprep.subr.mxu0 0.0
    %296 = vmatpush1.msra.mxu0 %v280
    %297 = vmatprep.subr.mxu0 0.0
    %298 = vmatpush1.msra.mxu0 %v279
    %299 = vmatprep.subr.mxu0 0.0
    %300 = vmatpush1.msra.mxu0 %v278
    %301 = vmatprep.subr.mxu0 0.0
    %302 = vmatpush1.msra.mxu0 %v277
    %303 = vmatprep.subr.mxu0 0.0
    %304 = vmatpush1.msra.mxu0 %v276
    %305 = vmatprep.subr.mxu0 0.0
    %306 = vmatpush1.msra.mxu0 %v275
    %307 = vmatprep.subr.mxu0 0.0
    %308 = vmatpush1.msra.mxu0 %v274
    %309 = vmatprep.subr.mxu0 0.0
    %310 = vmatpush1.msra.mxu0 %v273
    %311 = vmatprep.subr.mxu0 0.0
    %312 = vmatpush1.msra.mxu0 %v272
    %313 = vmatprep.subr.mxu0 0.0
    %314 = vmatpush1.msra.mxu0 %v271
    %315 = vmatprep.subr.mxu0 0.0
    %316 = vmatpush1.msra.mxu0 %v270
    %317 = vmatprep.subr.mxu0 0.0
    %318 = vmatpush1.msra.mxu0 %v269
    %319 = vmatprep.subr.mxu0 0.0
    %320 = vmatpush1.msra.mxu0 %v268
    %321 = vmatprep.subr.mxu0 0.0
    %322 = vmatpush2.msra.mxu0 0.0
    %323 = vmatprep.subr.mxu0 0.0
    %324 = vmatpush2.msra.mxu0 0.0
    %325 = vmatprep.subr.mxu0 0.0
    %326 = vmatpush2.msra.mxu0 0.0
    %327 = vmatprep.subr.mxu0 0.0
    %328 = vmatpush2.msra.mxu0 0.0
    %329 = vmatprep.subr.mxu0 0.0
    %330 = vmatpush2.msra.mxu0 0.0
    %331 = vmatprep.subr.mxu0 0.0
    %332 = vmatpush2.msra.mxu0 0.0
    %333 = vmatprep.subr.mxu0 0.0
    %334 = vmatpush2.msra.mxu0 0.0
    %335 = vmatprep.subr.mxu0 0.0
    %336 = vmatpush2.msra.mxu0 0.0
    %337 = vmatprep.subr.mxu0 0.0
    %338 = vmatpush2.msra.mxu0 0.0
    %339 = vmatprep.subr.mxu0 0.0
    %340 = vmatpush2.msra.mxu0 0.0
    %341 = vmatprep.subr.mxu0 0.0
    %342 = vmatpush2.msra.mxu0 0.0
    %343 = vmatprep.subr.mxu0 0.0
    %344 = vmatpush2.msra.mxu0 0.0
    %345 = vmatprep.subr.mxu0 0.0
    %346 = vmatpush2.msra.mxu0 0.0
    %347 = vmatprep.subr.mxu0 0.0
    %348 = vmatpush2.msra.mxu0 0.0
    %349 = vmatprep.subr.mxu0 0.0
    %350 = vmatpush2.msra.mxu0 0.0
    %351 = vmatprep.subr.mxu0 0.0
    %352 = vmatpush2.msra.mxu0 0.0
    %353 = vmatprep.mubr.f32.mxu0 0.0
    %354 = vmatmul.mubr.f32.gmra.mxu0 %v266
    %v355 = vpop.f32.mrf.mxu0
    %v356 = vadd.f32 %v288, %v355
    %v357 = vpop.f32.mrf.mxu0
    %358 = vdwg.mxu0
    %v359 = vmax.f32 %v356, 0.0
    %s360 = scalar_lea.vmem [#allocation5], 384
    %v361 = vld [vmem:[%s360] sm:$0xff]
    %v362 = vld [vmem:[%s360 + $0x8] sm:$0xff]
    %v363 = vld [vmem:[%s360 + $0x10] sm:$0xff]
    %v364 = vld [vmem:[%s360 + $0x18] sm:$0xff]
    %v365 = vld [vmem:[%s360 + $0x20] sm:$0xff]
    %v366 = vld [vmem:[%s360 + $0x28] sm:$0xff]
    %v367 = vld [vmem:[%s360 + $0x30] sm:$0xff]
    %v368 = vld [vmem:[%s360 + $0x38] sm:$0xff]
    %v369 = vld [vmem:[%s360 + $0x40] sm:$0xff]
    %v370 = vld [vmem:[%s360 + $0x48] sm:$0xff]
    %v371 = vld [vmem:[%s360 + $0x50] sm:$0xff]
    %v372 = vld [vmem:[%s360 + $0x58] sm:$0xff]
    %v373 = vld [vmem:[%s360 + $0x60] sm:$0xff]
    %v374 = vld [vmem:[%s360 + $0x68] sm:$0xff]
    %v375 = vld [vmem:[%s360 + $0x70] sm:$0xff]
    %v376 = vld [vmem:[%s360 + $0x78] sm:$0xff]
    %v377 = vld [vmem:[#allocation7 + $0x5] sm:$0x1]
    %v378 = vlaneseq
    %v379 = vshrl.u32 %v378, 7
    %v380 = vsub.s32 0, %v379
    %v381 = vrot.slane %v377, %v380
    %382 = vmatprep.subr.mxu0 0.0
    %383 = vmatpush1.msra.mxu0 %v376
    %384 = vmatprep.subr.mxu0 0.0
    %385 = vmatpush1.msra.mxu0 %v375
    %386 = vmatprep.subr.mxu0 0.0
    %387 = vmatpush1.msra.mxu0 %v374
    %388 = vmatprep.subr.mxu0 0.0
    %389 = vmatpush1.msra.mxu0 %v373
    %390 = vmatprep.subr.mxu0 0.0
    %391 = vmatpush1.msra.mxu0 %v372
    %392 = vmatprep.subr.mxu0 0.0
    %393 = vmatpush1.msra.mxu0 %v371
    %394 = vmatprep.subr.mxu0 0.0
    %395 = vmatpush1.msra.mxu0 %v370
    %396 = vmatprep.subr.mxu0 0.0
    %397 = vmatpush1.msra.mxu0 %v369
    %398 = vmatprep.subr.mxu0 0.0
    %399 = vmatpush1.msra.mxu0 %v368
    %400 = vmatprep.subr.mxu0 0.0
    %401 = vmatpush1.msra.mxu0 %v367
    %402 = vmatprep.subr.mxu0 0.0
    %403 = vmatpush1.msra.mxu0 %v366
    %404 = vmatprep.subr.mxu0 0.0
    %405 = vmatpush1.msra.mxu0 %v365
    %406 = vmatprep.subr.mxu0 0.0
    %407 = vmatpush1.msra.mxu0 %v364
    %408 = vmatprep.subr.mxu0 0.0
    %409 = vmatpush1.msra.mxu0 %v363
    %410 = vmatprep.subr.mxu0 0.0
    %411 = vmatpush1.msra.mxu0 %v362
    %412 = vmatprep.subr.mxu0 0.0
    %413 = vmatpush1.msra.mxu0 %v361
    %414 = vmatprep.subr.mxu0 0.0
    %415 = vmatpush2.msra.mxu0 0.0
    %416 = vmatprep.subr.mxu0 0.0
    %417 = vmatpush2.msra.mxu0 0.0
    %418 = vmatprep.subr.mxu0 0.0
    %419 = vmatpush2.msra.mxu0 0.0
    %420 = vmatprep.subr.mxu0 0.0
    %421 = vmatpush2.msra.mxu0 0.0
    %422 = vmatprep.subr.mxu0 0.0
    %423 = vmatpush2.msra.mxu0 0.0
    %424 = vmatprep.subr.mxu0 0.0
    %425 = vmatpush2.msra.mxu0 0.0
    %426 = vmatprep.subr.mxu0 0.0
    %427 = vmatpush2.msra.mxu0 0.0
    %428 = vmatprep.subr.mxu0 0.0
    %429 = vmatpush2.msra.mxu0 0.0
    %430 = vmatprep.subr.mxu0 0.0
    %431 = vmatpush2.msra.mxu0 0.0
    %432 = vmatprep.subr.mxu0 0.0
    %433 = vmatpush2.msra.mxu0 0.0
    %434 = vmatprep.subr.mxu0 0.0
    %435 = vmatpush2.msra.mxu0 0.0
    %436 = vmatprep.subr.mxu0 0.0
    %437 = vmatpush2.msra.mxu0 0.0
    %438 = vmatprep.subr.mxu0 0.0
    %439 = vmatpush2.msra.mxu0 0.0
    %440 = vmatprep.subr.mxu0 0.0
    %441 = vmatpush2.msra.mxu0 0.0
    %442 = vmatprep.subr.mxu0 0.0
    %443 = vmatpush2.msra.mxu0 0.0
    %444 = vmatprep.subr.mxu0 0.0
    %445 = vmatpush2.msra.mxu0 0.0
    %446 = vmatprep.mubr.f32.mxu0 0.0
    %447 = vmatmul.mubr.f32.gmra.mxu0 %v359
    %v448 = vpop.f32.mrf.mxu0
    %v449 = vadd.f32 %v381, %v448
    %v450 = vpop.f32.mrf.mxu0
    %451 = vdwg.mxu0
    %v452 = vmax.f32 %v449, 0.0
    %s453 = scalar_lea.vmem [#allocation5], 512
    %v454 = vld [vmem:[%s453] sm:$0xff]
    %v455 = vld [vmem:[%s453 + $0x8] sm:$0xff]
    %v456 = vld [vmem:[%s453 + $0x10] sm:$0xff]
    %v457 = vld [vmem:[%s453 + $0x18] sm:$0xff]
    %v458 = vld [vmem:[%s453 + $0x20] sm:$0xff]
    %v459 = vld [vmem:[%s453 + $0x28] sm:$0xff]
    %v460 = vld [vmem:[%s453 + $0x30] sm:$0xff]
    %v461 = vld [vmem:[%s453 + $0x38] sm:$0xff]
    %v462 = vld [vmem:[%s453 + $0x40] sm:$0xff]
    %v463 = vld [vmem:[%s453 + $0x48] sm:$0xff]
    %v464 = vld [vmem:[%s453 + $0x50] sm:$0xff]
    %v465 = vld [vmem:[%s453 + $0x58] sm:$0xff]
    %v466 = vld [vmem:[%s453 + $0x60] sm:$0xff]
    %v467 = vld [vmem:[%s453 + $0x68] sm:$0xff]
    %v468 = vld [vmem:[%s453 + $0x70] sm:$0xff]
    %v469 = vld [vmem:[%s453 + $0x78] sm:$0xff]
    %v470 = vld [vmem:[#allocation7 + $0x6] sm:$0x1]
    %v471 = vlaneseq
    %v472 = vshrl.u32 %v471, 7
    %v473 = vsub.s32 0, %v472
    %v474 = vrot.slane %v470, %v473
    %475 = vmatprep.subr.mxu0 0.0
    %476 = vmatpush1.msra.mxu0 %v469
    %477 = vmatprep.subr.mxu0 0.0
    %478 = vmatpush1.msra.mxu0 %v468
    %479 = vmatprep.subr.mxu0 0.0
    %480 = vmatpush1.msra.mxu0 %v467
    %481 = vmatprep.subr.mxu0 0.0
    %482 = vmatpush1.msra.mxu0 %v466
    %483 = vmatprep.subr.mxu0 0.0
    %484 = vmatpush1.msra.mxu0 %v465
    %485 = vmatprep.subr.mxu0 0.0
    %486 = vmatpush1.msra.mxu0 %v464
    %487 = vmatprep.subr.mxu0 0.0
    %488 = vmatpush1.msra.mxu0 %v463
    %489 = vmatprep.subr.mxu0 0.0
    %490 = vmatpush1.msra.mxu0 %v462
    %491 = vmatprep.subr.mxu0 0.0
    %492 = vmatpush1.msra.mxu0 %v461
    %493 = vmatprep.subr.mxu0 0.0
    %494 = vmatpush1.msra.mxu0 %v460
    %495 = vmatprep.subr.mxu0 0.0
    %496 = vmatpush1.msra.mxu0 %v459
    %497 = vmatprep.subr.mxu0 0.0
    %498 = vmatpush1.msra.mxu0 %v458
    %499 = vmatprep.subr.mxu0 0.0
    %500 = vmatpush1.msra.mxu0 %v457
    %501 = vmatprep.subr.mxu0 0.0
    %502 = vmatpush1.msra.mxu0 %v456
    %503 = vmatprep.subr.mxu0 0.0
    %504 = vmatpush1.msra.mxu0 %v455
    %505 = vmatprep.subr.mxu0 0.0
    %506 = vmatpush1.msra.mxu0 %v454
    %507 = vmatprep.subr.mxu0 0.0
    %508 = vmatpush2.msra.mxu0 0.0
    %509 = vmatprep.subr.mxu0 0.0
    %510 = vmatpush2.msra.mxu0 0.0
    %511 = vmatprep.subr.mxu0 0.0
    %512 = vmatpush2.msra.mxu0 0.0
    %513 = vmatprep.subr.mxu0 0.0
    %514 = vmatpush2.msra.mxu0 0.0
    %515 = vmatprep.subr.mxu0 0.0
    %516 = vmatpush2.msra.mxu0 0.0
    %517 = vmatprep.subr.mxu0 0.0
    %518 = vmatpush2.msra.mxu0 0.0
    %519 = vmatprep.subr.mxu0 0.0
    %520 = vmatpush2.msra.mxu0 0.0
    %521 = vmatprep.subr.mxu0 0.0
    %522 = vmatpush2.msra.mxu0 0.0
    %523 = vmatprep.subr.mxu0 0.0
    %524 = vmatpush2.msra.mxu0 0.0
    %525 = vmatprep.subr.mxu0 0.0
    %526 = vmatpush2.msra.mxu0 0.0
    %527 = vmatprep.subr.mxu0 0.0
    %528 = vmatpush2.msra.mxu0 0.0
    %529 = vmatprep.subr.mxu0 0.0
    %530 = vmatpush2.msra.mxu0 0.0
    %531 = vmatprep.subr.mxu0 0.0
    %532 = vmatpush2.msra.mxu0 0.0
    %533 = vmatprep.subr.mxu0 0.0
    %534 = vmatpush2.msra.mxu0 0.0
    %535 = vmatprep.subr.mxu0 0.0
    %536 = vmatpush2.msra.mxu0 0.0
    %537 = vmatprep.subr.mxu0 0.0
    %538 = vmatpush2.msra.mxu0 0.0
    %539 = vmatprep.mubr.f32.mxu0 0.0
    %540 = vmatmul.mubr.f32.gmra.mxu0 %v452
    %v541 = vpop.f32.mrf.mxu0
    %v542 = vadd.f32 %v474, %v541
    %v543 = vpop.f32.mrf.mxu0
    %544 = vdwg.mxu0
    %v545 = vrot.slane %v542, 4
    %v546 = vadd.f32 %v542, %v545
    %v547 = vrot.slane %v546, 2
    %v548 = vadd.f32 %v546, %v547
    %v549 = vrot.slane %v548, 1
    %v550 = vadd.f32 %v548, %v549
    %v551 = vmul.f32 %v542, %v542
    %v552 = vrot.slane %v551, 4
    %v553 = vadd.f32 %v551, %v552
    %v554 = vrot.slane %v553, 2
    %v555 = vadd.f32 %v553, %v554
    %v556 = vrot.slane %v555, 1
    %v557 = vadd.f32 %v555, %v556
    %v558 = vmul.f32 %v550, 0.125
    %v559 = vmul.f32 %v557, 0.125
    %v560 = vmul.f32 %v558, %v558
    %v561 = vsub.f32 %v559, %v560
    %v562 = vmax.f32 %v561, 0.0
    %v563 = vld [vmem:[#allocation7 + $0x7] sm:$0x1]
    %v564 = vadd.f32 %v562, 1e-05
    %v565 = vrsqrt.pop %v564
    %v566 = vmul.f32 %v563, %v565
    %v567 = vld [vmem:[#allocation7 + $0x8] sm:$0x1]
    %v568 = vmul.f32 %v558, %v566
    %v569 = vsub.f32 %v567, %v568
    %v570 = vlaneseq
    %v571 = vshrl.u32 %v570, 7
    %v572 = vsub.s32 0, %v571
    %v573 = vrot.slane %v566, %v572
    %v574 = vmul.f32 %v542, %v573
    %v575 = vlaneseq
    %v576 = vshrl.u32 %v575, 7
    %v577 = vsub.s32 0, %v576
    %v578 = vrot.slane %v569, %v577
    %v579 = vadd.f32 %v574, %v578
    %v580 = vmax.f32 %v579, 0.0
    %s581 = scalar_lea.vmem [#allocation5], 640
    %v582 = vld [vmem:[%s581] sm:$0xff]
    %v583 = vld [vmem:[%s581 + $0x8] sm:$0xff]
    %v584 = vld [vmem:[%s581 + $0x10] sm:$0xff]
    %v585 = vld [vmem:[%s581 + $0x18] sm:$0xff]
    %v586 = vld [vmem:[%s581 + $0x20] sm:$0xff]
    %v587 = vld [vmem:[%s581 + $0x28] sm:$0xff]
    %v588 = vld [vmem:[%s581 + $0x30] sm:$0xff]
    %v589 = vld [vmem:[%s581 + $0x38] sm:$0xff]
    %v590 = vld [vmem:[%s581 + $0x40] sm:$0xff]
    %v591 = vld [vmem:[%s581 + $0x48] sm:$0xff]
    %v592 = vld [vmem:[%s581 + $0x50] sm:$0xff]
    %v593 = vld [vmem:[%s581 + $0x58] sm:$0xff]
    %v594 = vld [vmem:[%s581 + $0x60] sm:$0xff]
    %v595 = vld [vmem:[%s581 + $0x68] sm:$0xff]
    %v596 = vld [vmem:[%s581 + $0x70] sm:$0xff]
    %v597 = vld [vmem:[%s581 + $0x78] sm:$0xff]
    %v598 = vld [vmem:[#allocation7 + $0x9] sm:$0x1]
    %v599 = vlaneseq
    %v600 = vshrl.u32 %v599, 7
    %v601 = vsub.s32 0, %v600
    %v602 = vrot.slane %v598, %v601
    %603 = vmatprep.subr.mxu0 0.0
    %604 = vmatpush1.msra.mxu0 %v597
    %605 = vmatprep.subr.mxu0 0.0
    %606 = vmatpush1.msra.mxu0 %v596
    %607 = vmatprep.subr.mxu0 0.0
    %608 = vmatpush1.msra.mxu0 %v595
    %609 = vmatprep.subr.mxu0 0.0
    %610 = vmatpush1.msra.mxu0 %v594
    %611 = vmatprep.subr.mxu0 0.0
    %612 = vmatpush1.msra.mxu0 %v593
    %613 = vmatprep.subr.mxu0 0.0
    %614 = vmatpush1.msra.mxu0 %v592
    %615 = vmatprep.subr.mxu0 0.0
    %616 = vmatpush1.msra.mxu0 %v591
    %617 = vmatprep.subr.mxu0 0.0
    %618 = vmatpush1.msra.mxu0 %v590
    %619 = vmatprep.subr.mxu0 0.0
    %620 = vmatpush1.msra.mxu0 %v589
    %621 = vmatprep.subr.mxu0 0.0
    %622 = vmatpush1.msra.mxu0 %v588
    %623 = vmatprep.subr.mxu0 0.0
    %624 = vmatpush1.msra.mxu0 %v587
    %625 = vmatprep.subr.mxu0 0.0
    %626 = vmatpush1.msra.mxu0 %v586
    %627 = vmatprep.subr.mxu0 0.0
    %628 = vmatpush1.msra.mxu0 %v585
    %629 = vmatprep.subr.mxu0 0.0
    %630 = vmatpush1.msra.mxu0 %v584
    %631 = vmatprep.subr.mxu0 0.0
    %632 = vmatpush1.msra.mxu0 %v583
    %633 = vmatprep.subr.mxu0 0.0
    %634 = vmatpush1.msra.mxu0 %v582
    %635 = vmatprep.subr.mxu0 0.0
    %636 = vmatpush2.msra.mxu0 0.0
    %637 = vmatprep.subr.mxu0 0.0
    %638 = vmatpush2.msra.mxu0 0.0
    %639 = vmatprep.subr.mxu0 0.0
    %640 = vmatpush2.msra.mxu0 0.0
    %641 = vmatprep.subr.mxu0 0.0
    %642 = vmatpush2.msra.mxu0 0.0
    %643 = vmatprep.subr.mxu0 0.0
    %644 = vmatpush2.msra.mxu0 0.0
    %645 = vmatprep.subr.mxu0 0.0
    %646 = vmatpush2.msra.mxu0 0.0
    %647 = vmatprep.subr.mxu0 0.0
    %648 = vmatpush2.msra.mxu0 0.0
    %649 = vmatprep.subr.mxu0 0.0
    %650 = vmatpush2.msra.mxu0 0.0
    %651 = vmatprep.subr.mxu0 0.0
    %652 = vmatpush2.msra.mxu0 0.0
    %653 = vmatprep.subr.mxu0 0.0
    %654 = vmatpush2.msra.mxu0 0.0
    %655 = vmatprep.subr.mxu0 0.0
    %656 = vmatpush2.msra.mxu0 0.0
    %657 = vmatprep.subr.mxu0 0.0
    %658 = vmatpush2.msra.mxu0 0.0
    %659 = vmatprep.subr.mxu0 0.0
    %660 = vmatpush2.msra.mxu0 0.0
    %661 = vmatprep.subr.mxu0 0.0
    %662 = vmatpush2.msra.mxu0 0.0
    %663 = vmatprep.subr.mxu0 0.0
    %664 = vmatpush2.msra.mxu0 0.0
    %665 = vmatprep.subr.mxu0 0.0
    %666 = vmatpush2.msra.mxu0 0.0
    %667 = vmatprep.mubr.f32.mxu0 0.0
    %668 = vmatmul.mubr.f32.gmra.mxu0 %v580
    %v669 = vpop.f32.mrf.mxu0
    %v670 = vadd.f32 %v602, %v669
    %v671 = vpop.f32.mrf.mxu0
    %672 = vdwg.mxu0
    %v673 = vmax.f32 %v670, 0.0
    %s674 = scalar_lea.vmem [#allocation5], 768
    %v675 = vld [vmem:[%s674] sm:$0xff]
    %v676 = vld [vmem:[%s674 + $0x8] sm:$0xff]
    %v677 = vld [vmem:[%s674 + $0x10] sm:$0xff]
    %v678 = vld [vmem:[%s674 + $0x18] sm:$0xff]
    %v679 = vld [vmem:[%s674 + $0x20] sm:$0xff]
    %v680 = vld [vmem:[%s674 + $0x28] sm:$0xff]
    %v681 = vld [vmem:[%s674 + $0x30] sm:$0xff]
    %v682 = vld [vmem:[%s674 + $0x38] sm:$0xff]
    %v683 = vld [vmem:[%s674 + $0x40] sm:$0xff]
    %v684 = vld [vmem:[%s674 + $0x48] sm:$0xff]
    %v685 = vld [vmem:[%s674 + $0x50] sm:$0xff]
    %v686 = vld [vmem:[%s674 + $0x58] sm:$0xff]
    %v687 = vld [vmem:[%s674 + $0x60] sm:$0xff]
    %v688 = vld [vmem:[%s674 + $0x68] sm:$0xff]
    %v689 = vld [vmem:[%s674 + $0x70] sm:$0xff]
    %v690 = vld [vmem:[%s674 + $0x78] sm:$0xff]
    %v691 = vld [vmem:[#allocation7 + $0xa] sm:$0x1]
    %v692 = vlaneseq
    %v693 = vshrl.u32 %v692, 7
    %v694 = vsub.s32 0, %v693
    %v695 = vrot.slane %v691, %v694
    %696 = vmatprep.subr.mxu0 0.0
    %697 = vmatpush1.msra.mxu0 %v690
    %698 = vmatprep.subr.mxu0 0.0
    %699 = vmatpush1.msra.mxu0 %v689
    %700 = vmatprep.subr.mxu0 0.0
    %701 = vmatpush1.msra.mxu0 %v688
    %702 = vmatprep.subr.mxu0 0.0
    %703 = vmatpush1.msra.mxu0 %v687
    %704 = vmatprep.subr.mxu0 0.0
    %705 = vmatpush1.msra.mxu0 %v686
    %706 = vmatprep.subr.mxu0 0.0
    %707 = vmatpush1.msra.mxu0 %v685
    %708 = vmatprep.subr.mxu0 0.0
    %709 = vmatpush1.msra.mxu0 %v684
    %710 = vmatprep.subr.mxu0 0.0
    %711 = vmatpush1.msra.mxu0 %v683
    %712 = vmatprep.subr.mxu0 0.0
    %713 = vmatpush1.msra.mxu0 %v682
    %714 = vmatprep.subr.mxu0 0.0
    %715 = vmatpush1.msra.mxu0 %v681
    %716 = vmatprep.subr.mxu0 0.0
    %717 = vmatpush1.msra.mxu0 %v680
    %718 = vmatprep.subr.mxu0 0.0
    %719 = vmatpush1.msra.mxu0 %v679
    %720 = vmatprep.subr.mxu0 0.0
    %721 = vmatpush1.msra.mxu0 %v678
    %722 = vmatprep.subr.mxu0 0.0
    %723 = vmatpush1.msra.mxu0 %v677
    %724 = vmatprep.subr.mxu0 0.0
    %725 = vmatpush1.msra.mxu0 %v676
    %726 = vmatprep.subr.mxu0 0.0
    %727 = vmatpush1.msra.mxu0 %v675
    %728 = vmatprep.subr.mxu0 0.0
    %729 = vmatpush2.msra.mxu0 0.0
    %730 = vmatprep.subr.mxu0 0.0
    %731 = vmatpush2.msra.mxu0 0.0
    %732 = vmatprep.subr.mxu0 0.0
    %733 = vmatpush2.msra.mxu0 0.0
    %734 = vmatprep.subr.mxu0 0.0
    %735 = vmatpush2.msra.mxu0 0.0
    %736 = vmatprep.subr.mxu0 0.0
    %737 = vmatpush2.msra.mxu0 0.0
    %738 = vmatprep.subr.mxu0 0.0
    %739 = vmatpush2.msra.mxu0 0.0
    %740 = vmatprep.subr.mxu0 0.0
    %741 = vmatpush2.msra.mxu0 0.0
    %742 = vmatprep.subr.mxu0 0.0
    %743 = vmatpush2.msra.mxu0 0.0
    %744 = vmatprep.subr.mxu0 0.0
    %745 = vmatpush2.msra.mxu0 0.0
    %746 = vmatprep.subr.mxu0 0.0
    %747 = vmatpush2.msra.mxu0 0.0
    %748 = vmatprep.subr.mxu0 0.0
    %749 = vmatpush2.msra.mxu0 0.0
    %750 = vmatprep.subr.mxu0 0.0
    %751 = vmatpush2.msra.mxu0 0.0
    %752 = vmatprep.subr.mxu0 0.0
    %753 = vmatpush2.msra.mxu0 0.0
    %754 = vmatprep.subr.mxu0 0.0
    %755 = vmatpush2.msra.mxu0 0.0
    %756 = vmatprep.subr.mxu0 0.0
    %757 = vmatpush2.msra.mxu0 0.0
    %758 = vmatprep.subr.mxu0 0.0
    %759 = vmatpush2.msra.mxu0 0.0
    %760 = vmatprep.mubr.f32.mxu0 0.0
    %761 = vmatmul.mubr.f32.gmra.mxu0 %v673
    %v762 = vpop.f32.mrf.mxu0
    %v763 = vadd.f32 %v695, %v762
    %v764 = vpop.f32.mrf.mxu0
    %765 = vdwg.mxu0
    %766 = vst [vmem:[#allocation8] sm:$0xff] %v763
    // Predicated region
    $region26: #{encoder_forward.1} parent=1 // pred_check
      _
    $region27: #{encoder_forward.1} parent=1 // pred_check_branch
      %768 = sbr.rel (0) target = $region29
    $region28: #{encoder_forward.1} parent=1 // pred_region
      %s770 = ssub.s32 128, 128
      %771 = vsyncadd [#allocation4], %s770
      %s773 = sshll.u32 [#allocation8], 4
      %s774 = int_to_ptr.vmem [resolvable:$true] %s773
      %776 = dma.vmem_to_hbm [thread:$0]  %s774, 128, %s3, [#allocation4]
    $region29: #{encoder_forward.1} parent=1 // pred_fallthru
      _
    // Predicated region
    $region30: #{encoder_forward.1} parent=1 // pred_check
      _
    $region31: #{encoder_forward.1} parent=1 // pred_check_branch
      %778 = sbr.rel (0) target = $region33
    $region32: #{encoder_forward.1} parent=1 // pred_region
      %779 = dma.done [#allocation4], 128
    $region33: #{encoder_forward.1} parent=1 // pred_fallthru
      _
    %780 = vsyncpa [#allocation3], 1
    %781 = vsyncpa [#allocation6], 1
    %782 = vsyncpa [#allocation4], 1

</llo_original>
